<compile_context>
chip_gen: v7x
topology: tpu7x:2x2x1
jax: 0.10.0
libtpu: 0.0.40
codegen_flags: <defaults>
</compile_context>

<pallas_src>
import jax
import jax.numpy as jnp
from jax.experimental import pallas as pl
from jax.experimental.pallas import tpu as pltpu


def _patch_merge_kernel(x_ref, w_ref, b_ref, o_ref):
    # x_ref: (tm, 2, W2, 2C)  zero-copy 2-row strips of the input image.
    #        strip row 0 (even image row) -> [tl | tr], row 1 (odd) -> [bl | br]
    # w_ref: (2, 2C, 2C) bf16  gamma-folded, row-permuted weights [W_even ; W_odd]
    # b_ref: (1, 2C) f32       bias = beta @ W
    # o_ref: (tm, W2, 2C)
    xe = x_ref[:, 0, :, :].astype(jnp.float32)             # (tm, W2, 2C) [tl|tr]
    xo = x_ref[:, 1, :, :].astype(jnp.float32)             # (tm, W2, 2C) [bl|br]

    # Centered two-pass LayerNorm statistics over the 4C merged features (f32).
    inv_n = 1.0 / (2 * xe.shape[-1])                       # 1 / (4C)
    mean = (jnp.sum(xe, axis=-1, keepdims=True)
            + jnp.sum(xo, axis=-1, keepdims=True)) * inv_n
    de = xe - mean
    do = xo - mean
    var = (jnp.sum(de * de, axis=-1, keepdims=True)
           + jnp.sum(do * do, axis=-1, keepdims=True)) * inv_n
    rstd = jax.lax.rsqrt(var + 1e-5)                       # nn.LayerNorm default eps

    ne = (de * rstd).astype(jnp.bfloat16)                  # gamma/beta live in W / bias
    no = (do * rstd).astype(jnp.bfloat16)

    # MXU matmuls in bf16 with f32 accumulation:
    #   y = [tl|tr]@(gW)_even + [bl|br]@(gW)_odd + beta@W  ==  (LN(m)*g+b) @ W
    # NOTE: the reshape is a free collapse when W2 % 8 == 0 (sublane aligned);
    # for Swin stages with W2 in {7, 14} it may materialize a relayout copy —
    # pad W2 in the wrapper view if a bundle dump shows that.
    tm, w2, c2 = ne.shape
    y = jnp.dot(ne.reshape(tm * w2, c2), w_ref[0],
                preferred_element_type=jnp.float32)
    y = y + jnp.dot(no.reshape(tm * w2, c2), w_ref[1],
                    preferred_element_type=jnp.float32)
    y = y + b_ref[...]                                     # (1, 2C) f32 bias
    o_ref[...] = y.reshape(tm, w2, -1).astype(o_ref.dtype)


def _vmem_capacity_bytes():
    try:
        return int(pltpu.get_tpu_info().vmem_capacity_bytes)
    except Exception:
        return 64 * 1024 * 1024          # conservative fallback (v7x-class)


def _round_up(n, m):
    return ((n + m - 1) // m) * m


def patch_merge_pallas(x, in_res, gamma, beta, w_in_out):
    """x: (B, H*W, C). gamma/beta: (4C,). w_in_out: (4C, 2C) = nn.Linear weight^T.
    Returns (B, H*W//4, 2C) in x.dtype (pass bf16 x to get bf16 I/O)."""
    H, W = in_res
    B, num_patch, C = x.shape
    assert num_patch == H * W and H % 2 == 0 and W % 2 == 0

    R = B * (H // 2)                     # one 2-image-row strip per grid row
    W2 = W // 2
    C2 = 2 * C

    # ---- zero-copy input view: fuses the 2x2 gather (no HBM round-trip) ------
    # x4[r, 0, q, :] = [tl | tr]   x4[r, 1, q, :] = [bl | br]
    x4 = x.reshape(R, 2, W2, C2)

    # ---- fold LayerNorm affine + concat order into the linear weights --------
    gr = gamma.astype(jnp.float32).reshape(4, C)            # blocks [tl, bl, tr, br]
    wr = w_in_out.astype(jnp.float32).reshape(4, C, C2)
    wg = wr * gr[:, :, None]                                # diag(gamma) @ W, per block
    w_even = jnp.concatenate([wg[0], wg[2]], axis=0)        # rows for [tl | tr]
    w_odd = jnp.concatenate([wg[1], wg[3]], axis=0)         # rows for [bl | br]
    w_stacked = jnp.stack([w_even, w_odd]).astype(jnp.bfloat16)   # (2, 2C, 2C)
    bias = (beta.astype(jnp.float32) @ w_in_out.astype(jnp.float32)).reshape(1, C2)

    # ---- generation-aware tiling / VMEM budget --------------------------------
    out_dtype = x.dtype
    lanes = _round_up(C2, 128)                              # (8,128) VMEM layout
    in_strip = 2 * _round_up(W2, 8) * lanes * x.dtype.itemsize
    out_strip = _round_up(W2, 8) * lanes * jnp.dtype(out_dtype).itemsize
    const_bytes = 2 * (2 * _round_up(C2, 8) * lanes * 2     # bf16 weights (dbl-buffered)
                       + 8 * lanes * 4)                     # f32 bias

    def est(t):                                             # double-buffered footprint
        return 2 * t * (in_strip + out_strip) + const_bytes

    vmem_cap = _vmem_capacity_bytes()
    small_vmem = vmem_cap <= 64 * 1024 * 1024               # v7x-class: 64 MiB, 2 TCs
    budget = (2 * vmem_cap) // 5                            # ~51 MiB v5e/v6e, ~25 MiB v7x
    tok_cap = 4096 if small_vmem else 8192                  # merged tokens per grid step
    tm = min(R,
             max(1, tok_cap // max(W2, 1)),
             max(1, (budget - const_bytes) // (2 * (in_strip + out_strip))))
    if small_vmem and R >= 4:
        tm = min(tm, -(-R // 4))      # keep >= 4 grid steps so both v7x TCs get work
    tm = max(1, tm)

    # est() already contains the x2 double-buffer factor; 1.2x headroom only.
    vmem_limit = int(min(max(int(1.2 * est(tm)), 4 * 1024 * 1024),
                         (32 if small_vmem else 64) * 1024 * 1024))

    grid = (pl.cdiv(R, tm),)                                # no divisibility requirement

    out = pl.pallas_call(
        _patch_merge_kernel,
        out_shape=jax.ShapeDtypeStruct((R, W2, C2), out_dtype),
        grid=grid,
        in_specs=[
            pl.BlockSpec((tm, 2, W2, C2), lambda i: (i, 0, 0, 0)),   # raw 2-row strips
            # (On v7x the two invariant inputs below could be single-buffered via
            #  pipeline_mode=pl.Buffered(1); their footprint is a few hundred KB,
            #  so the default is kept for portability.)
            pl.BlockSpec((2, C2, C2), lambda i: (0, 0, 0)),          # folded weights
            pl.BlockSpec((1, C2), lambda i: (0, 0)),                 # beta @ W bias
        ],
        out_specs=pl.BlockSpec((tm, W2, C2), lambda i: (i, 0, 0)),   # unpadded 2C lanes
        compiler_params=pltpu.CompilerParams(
            dimension_semantics=("parallel",),
            vmem_limit_bytes=vmem_limit),
    )(x4, w_stacked, bias)

    return out.reshape(B, (H // 2) * W2, C2)


def patch_merge_ref(x, in_res, gamma, beta, w_in_out):
    """Pure-JAX reference mirroring the PyTorch forward."""
    H, W = in_res
    B, _, C = x.shape
    xv = x.reshape(B, H, W, C)
    xm = jnp.concatenate(
        [xv[:, 0::2, 0::2, :], xv[:, 1::2, 0::2, :],
         xv[:, 0::2, 1::2, :], xv[:, 1::2, 1::2, :]], axis=-1)
    xm = xm.reshape(B, -1, 4 * C).astype(jnp.float32)
    mean = jnp.mean(xm, axis=-1, keepdims=True)
    var = jnp.mean((xm - mean) ** 2, axis=-1, keepdims=True)
    xn = (xm - mean) / jnp.sqrt(var + 1e-5)
    xn = xn * gamma + beta
    return jnp.einsum("blk,ko->blo", xn, w_in_out)


if __name__ == "__main__":
    # Small demo shapes consistent with the module: in_res=(16,16), dimension=4, batch=2.
    # (Real Swin tuning should use C >= 96 so the 4C/2C dims fill the 128 lanes; at
    #  C=4 the kernel is dominated by fixed overhead, not MXU/DMA throughput.)
    B, H, W, C = 2, 16, 16, 4
    in_res = (H, W)

    key = jax.random.PRNGKey(0)
    kx, kw, kg, kb = jax.random.split(key, 4)

    x = jax.random.normal(kx, (B, H * W, C), dtype=jnp.float32)

    # Deterministic synthetic parameters (non-trivial gamma/beta exercise the
    # folding into the weights / bias).
    gamma = 1.0 + 0.1 * jax.random.normal(kg, (4 * C,), dtype=jnp.float32)
    beta = 0.1 * jax.random.normal(kb, (4 * C,), dtype=jnp.float32)
    # nn.Linear(4C, 2C, bias=False): weight is (2C, 4C); we store its transpose.
    w = jax.random.normal(kw, (4 * C, 2 * C), dtype=jnp.float32) * 0.05

    out = patch_merge_pallas(x, in_res, gamma, beta, w)
    out = jax.block_until_ready(out)

    ref = patch_merge_ref(x, in_res, gamma, beta, w)
    assert out.shape == (B, (H // 2) * (W // 2), 2 * C)
    # Accepted precision contract: bf16 MXU operands / bf16 gamma-folded weights
    # with f32 stats + f32 accumulation vs. the pure-f32 reference.
    assert jnp.allclose(out, ref, atol=2e-2, rtol=2e-2), \
        float(jnp.max(jnp.abs(out - ref)))

    print("KERNEL_OK")
</pallas_src>

<mosaic_0001>
module attributes {stable_mosaic.version = 11 : i64} {
  func.func @_patch_merge_kernel(%arg0: i32, %arg1: memref<4x2x8x8xf32, #tpu.memory_space<vmem>>, %arg2: memref<2x8x8xbf16, #tpu.memory_space<vmem>>, %arg3: memref<1x8xf32, #tpu.memory_space<vmem>>, %arg4: memref<4x8x8xf32, #tpu.memory_space<vmem>>) attributes {dimension_semantics = [#tpu.dimension_semantics<parallel>], iteration_bounds = array<i64: 4>, scalar_prefetch = 0 : i64, scratch_operands = 0 : i64, tpu.core_type = #tpu.core_type<tc>, window_params = [{transform_indices = @transform_0, window_bounds = array<i64: 4, 2, 8, 8>}, {pipeline_mode = #tpu.pipeline_mode<synchronous>, transform_indices = @transform_1, window_bounds = array<i64: 2, 8, 8>}, {pipeline_mode = #tpu.pipeline_mode<synchronous>, transform_indices = @transform_2, window_bounds = array<i64: 1, 8>}, {transform_indices = @transform_3, window_bounds = array<i64: 4, 8, 8>}]} {
    %c0 = arith.constant 0 : index
    %c0_0 = arith.constant 0 : index
    %c0_1 = arith.constant 0 : index
    %c0_2 = arith.constant 0 : index
    %0 = vector.load %arg1[%c0, %c0_0, %c0_1, %c0_2] : memref<4x2x8x8xf32, #tpu.memory_space<vmem>>, vector<4x1x8x8xf32>
    %1 = vector.shape_cast %0 : vector<4x1x8x8xf32> to vector<4x8x8xf32>
    %c0_3 = arith.constant 0 : index
    %c1 = arith.constant 1 : index
    %c0_4 = arith.constant 0 : index
    %c0_5 = arith.constant 0 : index
    %2 = vector.load %arg1[%c0_3, %c1, %c0_4, %c0_5] : memref<4x2x8x8xf32, #tpu.memory_space<vmem>>, vector<4x1x8x8xf32>
    %3 = vector.shape_cast %2 : vector<4x1x8x8xf32> to vector<4x8x8xf32>
    %cst = arith.constant dense<0.000000e+00> : vector<4x8xf32>
    %4 = vector.multi_reduction <add>, %1, %cst [2] : vector<4x8x8xf32> to vector<4x8xf32>
    %5 = vector.shape_cast %4 : vector<4x8xf32> to vector<4x8x1xf32>
    %cst_6 = arith.constant dense<0.000000e+00> : vector<4x8xf32>
    %6 = vector.multi_reduction <add>, %3, %cst_6 [2] : vector<4x8x8xf32> to vector<4x8xf32>
    %7 = vector.shape_cast %6 : vector<4x8xf32> to vector<4x8x1xf32>
    %8 = arith.addf %5, %7 : vector<4x8x1xf32>
    %cst_7 = arith.constant 6.250000e-02 : f32
    %9 = vector.broadcast %cst_7 : f32 to vector<4x8x1xf32>
    %10 = arith.mulf %8, %9 : vector<4x8x1xf32>
    %11 = vector.broadcast %10 : vector<4x8x1xf32> to vector<4x8x8xf32>
    %12 = arith.subf %1, %11 : vector<4x8x8xf32>
    %13 = vector.broadcast %10 : vector<4x8x1xf32> to vector<4x8x8xf32>
    %14 = arith.subf %3, %13 : vector<4x8x8xf32>
    %15 = arith.mulf %12, %12 : vector<4x8x8xf32>
    %cst_8 = arith.constant dense<0.000000e+00> : vector<4x8xf32>
    %16 = vector.multi_reduction <add>, %15, %cst_8 [2] : vector<4x8x8xf32> to vector<4x8xf32>
    %17 = vector.shape_cast %16 : vector<4x8xf32> to vector<4x8x1xf32>
    %18 = arith.mulf %14, %14 : vector<4x8x8xf32>
    %cst_9 = arith.constant dense<0.000000e+00> : vector<4x8xf32>
    %19 = vector.multi_reduction <add>, %18, %cst_9 [2] : vector<4x8x8xf32> to vector<4x8xf32>
    %20 = vector.shape_cast %19 : vector<4x8xf32> to vector<4x8x1xf32>
    %21 = arith.addf %17, %20 : vector<4x8x1xf32>
    %cst_10 = arith.constant 6.250000e-02 : f32
    %22 = vector.broadcast %cst_10 : f32 to vector<4x8x1xf32>
    %23 = arith.mulf %21, %22 : vector<4x8x1xf32>
    %cst_11 = arith.constant 9.99999974E-6 : f32
    %24 = vector.broadcast %cst_11 : f32 to vector<4x8x1xf32>
    %25 = arith.addf %23, %24 : vector<4x8x1xf32>
    %26 = math.rsqrt %25 : vector<4x8x1xf32>
    %27 = vector.broadcast %26 : vector<4x8x1xf32> to vector<4x8x8xf32>
    %28 = arith.mulf %12, %27 : vector<4x8x8xf32>
    %29 = arith.truncf %28 : vector<4x8x8xf32> to vector<4x8x8xbf16>
    %30 = vector.broadcast %26 : vector<4x8x1xf32> to vector<4x8x8xf32>
    %31 = arith.mulf %14, %30 : vector<4x8x8xf32>
    %32 = arith.truncf %31 : vector<4x8x8xf32> to vector<4x8x8xbf16>
    %33 = vector.shape_cast %29 : vector<4x8x8xbf16> to vector<32x8xbf16>
    %c0_12 = arith.constant 0 : index
    %c0_13 = arith.constant 0 : index
    %c0_14 = arith.constant 0 : index
    %34 = vector.load %arg2[%c0_12, %c0_13, %c0_14] : memref<2x8x8xbf16, #tpu.memory_space<vmem>>, vector<1x8x8xbf16>
    %35 = vector.shape_cast %34 : vector<1x8x8xbf16> to vector<8x8xbf16>
    %cst_15 = arith.constant dense<0.000000e+00> : vector<32x8xf32>
    %36 = tpu.matmul %33, %35, %cst_15 {dimension_numbers = #tpu.dot_dimension_numbers<[1], [0], [0], [1], [0, 0, 1, 1], [], []>} : vector<32x8xbf16>, vector<8x8xbf16>, vector<32x8xf32> -> vector<32x8xf32>
    %37 = vector.shape_cast %32 : vector<4x8x8xbf16> to vector<32x8xbf16>
    %c1_16 = arith.constant 1 : index
    %c0_17 = arith.constant 0 : index
    %c0_18 = arith.constant 0 : index
    %38 = vector.load %arg2[%c1_16, %c0_17, %c0_18] : memref<2x8x8xbf16, #tpu.memory_space<vmem>>, vector<1x8x8xbf16>
    %39 = vector.shape_cast %38 : vector<1x8x8xbf16> to vector<8x8xbf16>
    %cst_19 = arith.constant dense<0.000000e+00> : vector<32x8xf32>
    %40 = tpu.matmul %37, %39, %cst_19 {dimension_numbers = #tpu.dot_dimension_numbers<[1], [0], [0], [1], [0, 0, 1, 1], [], []>} : vector<32x8xbf16>, vector<8x8xbf16>, vector<32x8xf32> -> vector<32x8xf32>
    %41 = arith.addf %36, %40 : vector<32x8xf32>
    %c0_20 = arith.constant 0 : index
    %c0_21 = arith.constant 0 : index
    %42 = vector.load %arg3[%c0_20, %c0_21] : memref<1x8xf32, #tpu.memory_space<vmem>>, vector<1x8xf32>
    %43 = vector.broadcast %42 : vector<1x8xf32> to vector<32x8xf32>
    %44 = arith.addf %41, %43 : vector<32x8xf32>
    %45 = vector.shape_cast %44 : vector<32x8xf32> to vector<4x8x8xf32>
    %c0_22 = arith.constant 0 : index
    %c0_23 = arith.constant 0 : index
    %c0_24 = arith.constant 0 : index
    %46 = vector.load %arg4[%c0_22, %c0_23, %c0_24] : memref<4x8x8xf32, #tpu.memory_space<vmem>>, vector<4x8x8xf32>
    tpu.vector_store %arg4[%c0_22, %c0_23, %c0_24], %45 {strides = array<i32>} : memref<4x8x8xf32, #tpu.memory_space<vmem>>, vector<4x8x8xf32>,
    return
  }
  func.func @transform_0(%arg0: i32) -> (i32, i32, i32, i32) {
    %c0_i32 = arith.constant 0 : i32
    %c0_i32_0 = arith.constant 0 : i32
    %c0_i32_1 = arith.constant 0 : i32
    %c0_i32_2 = arith.constant 0 : i32
    return %arg0, %c0_i32, %c0_i32_0, %c0_i32_1 : i32, i32, i32, i32
  }
  func.func @transform_1(%arg0: i32) -> (i32, i32, i32) {
    %c0_i32 = arith.constant 0 : i32
    %c0_i32_0 = arith.constant 0 : i32
    %c0_i32_1 = arith.constant 0 : i32
    %c0_i32_2 = arith.constant 0 : i32
    return %c0_i32, %c0_i32_0, %c0_i32_1 : i32, i32, i32
  }
  func.func @transform_2(%arg0: i32) -> (i32, i32) {
    %c0_i32 = arith.constant 0 : i32
    %c0_i32_0 = arith.constant 0 : i32
    %c0_i32_1 = arith.constant 0 : i32
    return %c0_i32, %c0_i32_0 : i32, i32
  }
  func.func @transform_3(%arg0: i32) -> (i32, i32, i32) {
    %c0_i32 = arith.constant 0 : i32
    %c0_i32_0 = arith.constant 0 : i32
    %c0_i32_1 = arith.constant 0 : i32
    return %arg0, %c0_i32, %c0_i32_0 : i32, i32, i32
  }
}

</mosaic_0001>

<llo_original>
// kernel: tpu_custom_call.1
$region0: #{tpu_custom_call.1}
  #allocation0 [shape = 'u32[]', space=smem, size = 0x4, offset = 0x4, fixed_abs, tag = 'smem constant byte address 0x4 - core index']
  #allocation1 [shape = 'u32[144,128]{1,0:T(1,128)}', space=vmem, size = 0x12000, scoped, tag = 'internal scratch']
  %s0 = inlined_call_operand.vmem [shape: f32[16,2,8,8], index: 0, kind: input, shape index: {}]
  %s1 = inlined_call_operand.vmem [shape: bf16[2,8,8], index: 1, kind: input, shape index: {}]
  %s2 = inlined_call_operand.vmem [shape: f32[1,8], index: 2, kind: input, shape index: {}]
  %s3 = inlined_call_operand.vmem [shape: f32[16,8,8], index: 3, kind: output, shape index: {}]
  %s4 = sld [smem:[#allocation0]]
  $region45: #{tpu_custom_call.1} parent=0
    _
  %s6 = ssub.s32 1, %s4
  %s7 = scalar_select 0, %s6, %s4
  loop: start=0, step=1, limit=6
  $region2: #{tpu_custom_call.1} parent=0 // loop_pre_header
    _
  $region3: #{tpu_custom_call.1} parent=0 // loop_header
    %s9 = sphi 0, %s13
    %p10 = scmp.ge.s32.totalorder %s9, 6
    %s19 = sphi 0, %s21
    %s22 = sphi 0, %s19
    %s23 = sphi 0, %s22
    %s39 = sphi 0, %s23
    %s43 = sphi 0, %s43
    %s45 = sphi 0, %s43
    %s46 = sphi 0, %s45
    %s60 = sphi 0, %s46
    %s64 = sphi 0, %s64
    %s66 = sphi 0, %s64
    %s67 = sphi 0, %s66
    %s81 = sphi 0, %s67
    %s87 = sphi 0, %s89
    %s90 = sphi 0, %s87
    %s91 = sphi 0, %s90
    %s107 = sphi 0, %s91
  $region4: #{tpu_custom_call.1} parent=0 // loop_header_branch
    %12 = sbr.rel (%p10) target = $region8
  $region5: #{tpu_custom_call.1} parent=0 // loop_body
    %s14 = ssub.s32 %s9, 1
    %s15 = ssub.s32 %s9, 2
    %s16 = sadd.s32 %s9, 1
    %s17 = ssub.s32 %s9, %s16
    %p18 = scmp.eq.s32.totalorder %s17, 0
    %s20 = sadd.s32 %s19, 1
    %s21 = scalar_select %p18, %s19, %s20
    %p24 = pneg %p18
    %p25 = scmp.eq.s32.totalorder %s9, 3
    %p26 = por %p24, %p25
    %p27 = scmp.ne.s32.totalorder %s19, %s22
    %p28 = scmp.eq.s32.totalorder %s9, 0
    %p29 = por %p27, %p28
    %p30 = scmp.ne.s32.totalorder %s19, %s22
    %p31 = scmp.eq.s32.totalorder %s14, 3
    %p32 = por %p30, %p31
    %p33 = scmp.ne.s32.totalorder %s22, %s23
    %p34 = scmp.eq.s32.totalorder %s14, 0
    %p35 = por %p33, %p34
    %p36 = scmp.ne.s32.totalorder %s22, %s23
    %p37 = scmp.eq.s32.totalorder %s15, 3
    %p38 = por %p36, %p37
    %p40 = scmp.ne.s32.totalorder %s23, %s39
    %p41 = scmp.eq.s32.totalorder %s15, 0
    %p42 = por %p40, %p41
    %s44 = sadd.s32 %s43, 1
    %p47 = scmp.eq.s32.totalorder %s9, 3
    %p48 = scmp.ne.s32.totalorder %s43, %s45
    %p49 = scmp.eq.s32.totalorder %s9, 0
    %p50 = por %p48, %p49
    %p51 = scmp.ne.s32.totalorder %s43, %s45
    %p52 = scmp.eq.s32.totalorder %s14, 3
    %p53 = por %p51, %p52
    %p54 = scmp.ne.s32.totalorder %s45, %s46
    %p55 = scmp.eq.s32.totalorder %s14, 0
    %p56 = por %p54, %p55
    %p57 = scmp.ne.s32.totalorder %s45, %s46
    %p58 = scmp.eq.s32.totalorder %s15, 3
    %p59 = por %p57, %p58
    %p61 = scmp.ne.s32.totalorder %s46, %s60
    %p62 = scmp.eq.s32.totalorder %s15, 0
    %p63 = por %p61, %p62
    %s65 = sadd.s32 %s64, 1
    %p68 = scmp.eq.s32.totalorder %s9, 3
    %p69 = scmp.ne.s32.totalorder %s64, %s66
    %p70 = scmp.eq.s32.totalorder %s9, 0
    %p71 = por %p69, %p70
    %p72 = scmp.ne.s32.totalorder %s64, %s66
    %p73 = scmp.eq.s32.totalorder %s14, 3
    %p74 = por %p72, %p73
    %p75 = scmp.ne.s32.totalorder %s66, %s67
    %p76 = scmp.eq.s32.totalorder %s14, 0
    %p77 = por %p75, %p76
    %p78 = scmp.ne.s32.totalorder %s66, %s67
    %p79 = scmp.eq.s32.totalorder %s15, 3
    %p80 = por %p78, %p79
    %p82 = scmp.ne.s32.totalorder %s67, %s81
    %p83 = scmp.eq.s32.totalorder %s15, 0
    %p84 = por %p82, %p83
    %s85 = ssub.s32 %s9, %s16
    %p86 = scmp.eq.s32.totalorder %s85, 0
    %s88 = sadd.s32 %s87, 1
    %s89 = scalar_select %p86, %s87, %s88
    %p92 = pneg %p86
    %p93 = scmp.eq.s32.totalorder %s9, 3
    %p94 = por %p92, %p93
    %p95 = scmp.ne.s32.totalorder %s87, %s90
    %p96 = scmp.eq.s32.totalorder %s9, 0
    %p97 = por %p95, %p96
    %p98 = scmp.ne.s32.totalorder %s87, %s90
    %p99 = scmp.eq.s32.totalorder %s14, 3
    %p100 = por %p98, %p99
    %p101 = scmp.ne.s32.totalorder %s90, %s91
    %p102 = scmp.eq.s32.totalorder %s14, 0
    %p103 = por %p101, %p102
    %p104 = scmp.ne.s32.totalorder %s90, %s91
    %p105 = scmp.eq.s32.totalorder %s15, 3
    %p106 = por %p104, %p105
    %p108 = scmp.ne.s32.totalorder %s91, %s107
    %p109 = scmp.eq.s32.totalorder %s15, 0
    %p110 = por %p108, %p109
    %p111 = scmp.le.s32.totalorder 1, %s9
    %p112 = scmp.lt.s32.totalorder %s9, 5
    %p113 = pnand %p111, %p112
    %p114 = pneg %p113
    // Predicated region
    $region9: #{tpu_custom_call.1} parent=5 // pred_check
      _
    $region10: #{tpu_custom_call.1} parent=5 // pred_check_branch
      %116 = sbr.rel (%p113) target = $region12
    $region11: #{tpu_custom_call.1} parent=5 // pred_region
      %s117 = ssub.s32 %s9, 1
      // Predicated region
      $region13: #{tpu_custom_call.1} parent=11 // pred_check
        %p118 = pneg %p56
      $region14: #{tpu_custom_call.1} parent=11 // pred_check_branch
        %120 = sbr.rel (%p118) target = $region16
      $region15: #{tpu_custom_call.1} parent=11 // pred_region
        _
      $region16: #{tpu_custom_call.1} parent=11 // pred_fallthru
        _
      // Predicated region
      $region17: #{tpu_custom_call.1} parent=11 // pred_check
        %p121 = pneg %p77
      $region18: #{tpu_custom_call.1} parent=11 // pred_check_branch
        %123 = sbr.rel (%p121) target = $region20
      $region19: #{tpu_custom_call.1} parent=11 // pred_region
        _
      $region20: #{tpu_custom_call.1} parent=11 // pred_fallthru
        _
    $region12: #{tpu_custom_call.1} parent=5 // pred_fallthru
      _
    %p124 = scmp.lt.s32.totalorder %s9, 4
    // Predicated region
    $region21: #{tpu_custom_call.1} parent=5 // pred_check
      %p125 = pneg %p124
    $region22: #{tpu_custom_call.1} parent=5 // pred_check_branch
      %127 = sbr.rel (%p125) target = $region24
    $region23: #{tpu_custom_call.1} parent=5 // pred_region
      // Predicated region
      $region25: #{tpu_custom_call.1} parent=23 // pred_check
        %p128 = pneg %p29
      $region26: #{tpu_custom_call.1} parent=23 // pred_check_branch
        %130 = sbr.rel (%p128) target = $region28
      $region27: #{tpu_custom_call.1} parent=23 // pred_region
        %s131 = smul.u32 4, %s9
        %p132 = scmp.lt.s32.totalorder %s131, 15
        %s133 = scalar_select %p132, %s131, 15
        %s134 = smul.addr %s133, 2
        %s135 = smul.addr %s134, 8
        %s136 = scalar_lea.vmem %s0, %s135
        %s137 = smul.u32 4, %s9
      $region28: #{tpu_custom_call.1} parent=23 // pred_fallthru
        _
    $region24: #{tpu_custom_call.1} parent=5 // pred_fallthru
      _
    %p138 = scmp.le.s32.totalorder 1, %s9
    %p139 = scmp.lt.s32.totalorder %s9, 5
    %p140 = pnand %p138, %p139
    %p141 = pneg %p140
    // Predicated region
    $region29: #{tpu_custom_call.1} parent=5 // pred_check
      _
    $region30: #{tpu_custom_call.1} parent=5 // pred_check_branch
      %143 = sbr.rel (%p140) target = $region32
    $region31: #{tpu_custom_call.1} parent=5 // pred_region
      %s144 = ssub.s32 %s9, 1
      %s145 = smul.u32 4, %s14
      %p146 = scmp.lt.s32.totalorder %s145, 15
      %s147 = scalar_select %p146, %s145, 15
      %s148 = smul.addr %s147, 2
      %s149 = smul.addr %s148, 8
      %s150 = scalar_lea.vmem %s0, %s149
      %p151 = pneg %p35
      %p152 = pneg %p32
      %p153 = pneg %p56
      %p154 = pneg %p53
      %p155 = pneg %p77
      %p156 = pneg %p74
      %p157 = pneg %p103
      %p158 = pneg %p100
      %s159 = smul.u32 4, %s14
      %p160 = scmp.lt.s32.totalorder %s159, 15
      %s161 = scalar_select %p160, %s159, 15
      %s162 = smul.addr %s161, 8
      %s163 = scalar_lea.vmem %s3, %s162
      %s164 = smul.u32 4, %s14
      %p165 = scmp.lt.s32.totalorder %s164, 15
      %s166 = scalar_select %p165, %s164, 15
      %s167 = smul.addr %s166, 2
      %s168 = smul.addr %s167, 8
      %s169 = scalar_lea.vmem %s0, %s168
      %s170 = smul.u32 4, %s14
      %s171 = smul.u32 4, %s14
      %p172 = scmp.lt.s32.totalorder %s171, 15
      %s173 = scalar_select %p172, %s171, 15
      %s174 = smul.addr %s173, 8
      %s175 = scalar_lea.vmem %s3, %s174
      %s176 = smul.u32 4, %s14
      %v178 = vld [vmem:[%s169] sm:$0xff]
      %v179 = vld [vmem:[%s169 + $0x10] sm:$0xff]
      %v180 = vld [vmem:[%s169 + $0x20] sm:$0xff]
      %v181 = vld [vmem:[%s169 + $0x30] sm:$0xff]
      %s182 = scalar_lea.vmem %s169, 8
      %v183 = vld [vmem:[%s182] sm:$0xff]
      %v184 = vld [vmem:[%s182 + $0x10] sm:$0xff]
      %v185 = vld [vmem:[%s182 + $0x20] sm:$0xff]
      %v186 = vld [vmem:[%s182 + $0x30] sm:$0xff]
      %vm187 = vcmask 64512
      %v188 = vsel %vm187, %v178, 0.0
      %189 = vadd.xlane.f32.xlu0 %v188
      %v190 = vpop.xlane.xlu0 %189
      %v191 = vsel %vm187, %v179, 0.0
      %192 = vadd.xlane.f32.xlu0 %v191
      %v193 = vpop.xlane.xlu0 %192
      %v194 = vsel %vm187, %v180, 0.0
      %195 = vadd.xlane.f32.xlu0 %v194
      %v196 = vpop.xlane.xlu0 %195
      %v197 = vsel %vm187, %v181, 0.0
      %198 = vadd.xlane.f32.xlu0 %v197
      %v199 = vpop.xlane.xlu0 %198
      %v200 = vsel %vm187, %v183, 0.0
      %201 = vadd.xlane.f32.xlu0 %v200
      %v202 = vpop.xlane.xlu0 %201
      %v203 = vsel %vm187, %v184, 0.0
      %204 = vadd.xlane.f32.xlu0 %v203
      %v205 = vpop.xlane.xlu0 %204
      %v206 = vsel %vm187, %v185, 0.0
      %207 = vadd.xlane.f32.xlu0 %v206
      %v208 = vpop.xlane.xlu0 %207
      %v209 = vsel %vm187, %v186, 0.0
      %210 = vadd.xlane.f32.xlu0 %v209
      %v211 = vpop.xlane.xlu0 %210
      %v212 = vadd.f32 %v190, %v202
      %v213 = vadd.f32 %v193, %v205
      %v214 = vadd.f32 %v196, %v208
      %v215 = vadd.f32 %v199, %v211
      %v216 = vmul.f32 %v212, 0.0625
      %v217 = vmul.f32 %v213, 0.0625
      %v218 = vmul.f32 %v214, 0.0625
      %v219 = vmul.f32 %v215, 0.0625
      %v220 = vsub.f32 %v178, %v216
      %v221 = vsub.f32 %v179, %v217
      %v222 = vsub.f32 %v180, %v218
      %v223 = vsub.f32 %v181, %v219
      %v224 = vsub.f32 %v183, %v216
      %v225 = vsub.f32 %v184, %v217
      %v226 = vsub.f32 %v185, %v218
      %v227 = vsub.f32 %v186, %v219
      %v228 = vmul.f32 %v220, %v220
      %v229 = vmul.f32 %v221, %v221
      %v230 = vmul.f32 %v222, %v222
      %v231 = vmul.f32 %v223, %v223
      %v232 = vsel %vm187, %v228, 0.0
      %233 = vadd.xlane.f32.xlu0 %v232
      %v234 = vpop.xlane.xlu0 %233
      %v235 = vsel %vm187, %v229, 0.0
      %236 = vadd.xlane.f32.xlu0 %v235
      %v237 = vpop.xlane.xlu0 %236
      %v238 = vsel %vm187, %v230, 0.0
      %239 = vadd.xlane.f32.xlu0 %v238
      %v240 = vpop.xlane.xlu0 %239
      %v241 = vsel %vm187, %v231, 0.0
      %242 = vadd.xlane.f32.xlu0 %v241
      %v243 = vpop.xlane.xlu0 %242
      %v244 = vmul.f32 %v224, %v224
      %v245 = vmul.f32 %v225, %v225
      %v246 = vmul.f32 %v226, %v226
      %v247 = vmul.f32 %v227, %v227
      %v248 = vsel %vm187, %v244, 0.0
      %249 = vadd.xlane.f32.xlu0 %v248
      %v250 = vpop.xlane.xlu0 %249
      %v251 = vsel %vm187, %v245, 0.0
      %252 = vadd.xlane.f32.xlu0 %v251
      %v253 = vpop.xlane.xlu0 %252
      %v254 = vsel %vm187, %v246, 0.0
      %255 = vadd.xlane.f32.xlu0 %v254
      %v256 = vpop.xlane.xlu0 %255
      %v257 = vsel %vm187, %v247, 0.0
      %258 = vadd.xlane.f32.xlu0 %v257
      %v259 = vpop.xlane.xlu0 %258
      %v260 = vadd.f32 %v234, %v250
      %v261 = vadd.f32 %v237, %v253
      %v262 = vadd.f32 %v240, %v256
      %v263 = vadd.f32 %v243, %v259
      %v264 = vmul.f32 %v260, 0.0625
      %v265 = vmul.f32 %v261, 0.0625
      %v266 = vmul.f32 %v262, 0.0625
      %v267 = vmul.f32 %v263, 0.0625
      %v268 = vadd.f32 %v264, 1e-05
      %v269 = vadd.f32 %v265, 1e-05
      %v270 = vadd.f32 %v266, 1e-05
      %v271 = vadd.f32 %v267, 1e-05
      %v272 = vrsqrt.pop %v268
      %v273 = vrsqrt.pop %v269
      %v274 = vrsqrt.pop %v270
      %v275 = vrsqrt.pop %v271
      %v276 = vmul.f32 %v220, %v272
      %v277 = vmul.f32 %v221, %v273
      %v278 = vmul.f32 %v222, %v274
      %v279 = vmul.f32 %v223, %v275
      %v280 = vpack.c.bf16 %v276, %v276
      %v281 = vpack.c.bf16 %v277, %v277
      %v282 = vpack.c.bf16 %v278, %v278
      %v283 = vpack.c.bf16 %v279, %v279
      %v284 = vmul.f32 %v224, %v272
      %v285 = vmul.f32 %v225, %v273
      %v286 = vmul.f32 %v226, %v274
      %v287 = vmul.f32 %v227, %v275
      %v288 = vpack.c.bf16 %v284, %v284
      %v289 = vpack.c.bf16 %v285, %v285
      %v290 = vpack.c.bf16 %v286, %v286
      %v291 = vpack.c.bf16 %v287, %v287
      %v292 = vld [vmem:[%s1] sm:$0xf]
      %s293 = scalar_lea.vmem %s1, 4
      %v294 = vld [vmem:[%s293] sm:$0xf]
      %v299 = vunpack.c.l.b16 %v288
      %v300 = vunpack.c.l.b16 %v289
      %v301 = vunpack.c.l.b16 %v290
      %v302 = vunpack.c.l.b16 %v291
      %v303 = vpack.c.b16 %v300, %v299
      %v304 = vpack.c.b16 %v302, %v301
      %v306 = vsel %vm187, %v303, 0
      %v309 = vsel %vm187, %v304, 0
      %vm311 = vcmask 1043456
      %v313 = vsel %vm311, %v294, 0
      %315 = vmatprep.subr.bf16.mxu0 0
      %316 = vmatpush1.bf16.msra.mxu0 %v313
      %317 = vmatprep.subr.bf16.mxu0 0
      %318 = vmatpush1.bf16.msra.mxu0 0
      %319 = vmatprep.subr.bf16.mxu0 0
      %320 = vmatpush1.bf16.msra.mxu0 0
      %321 = vmatprep.subr.bf16.mxu0 0
      %322 = vmatpush1.bf16.msra.mxu0 0
      %323 = vmatprep.subr.bf16.mxu0 0
      %324 = vmatpush1.bf16.msra.mxu0 0
      %325 = vmatprep.subr.bf16.mxu0 0
      %326 = vmatpush1.bf16.msra.mxu0 0
      %327 = vmatprep.subr.bf16.mxu0 0
      %328 = vmatpush1.bf16.msra.mxu0 0
      %329 = vmatprep.subr.bf16.mxu0 0
      %330 = vmatpush1.bf16.msra.mxu0 0
      %331 = vmatprep.subr.bf16.mxu0 0
      %332 = vmatpush1.bf16.msra.mxu0 0
      %333 = vmatprep.subr.bf16.mxu0 0
      %334 = vmatpush1.bf16.msra.mxu0 0
      %335 = vmatprep.subr.bf16.mxu0 0
      %336 = vmatpush1.bf16.msra.mxu0 0
      %337 = vmatprep.subr.bf16.mxu0 0
      %338 = vmatpush1.bf16.msra.mxu0 0
      %339 = vmatprep.subr.bf16.mxu0 0
      %340 = vmatpush1.bf16.msra.mxu0 0
      %341 = vmatprep.subr.bf16.mxu0 0
      %342 = vmatpush1.bf16.msra.mxu0 0
      %343 = vmatprep.subr.bf16.mxu0 0
      %344 = vmatpush1.bf16.msra.mxu0 0
      %345 = vmatprep.subr.bf16.mxu0 0
      %346 = vmatpush1.bf16.msra.mxu0 0
      %347 = vmatprep.mubr.bf16.mxu0 0
      %348 = vmatmul.mubr.bf16.gmra.mrb[0].mxu0 %v306
      %v349 = vpop.f32.mrb[0].mxu0
      %v350 = vadd.f32 0.0, %v349
      %v351 = vpop.f32.mrb[0].mxu0
      %v352 = vpop.f32.mrb[0].mxu0
      %v353 = vadd.f32 0.0, %v352
      %v354 = vpop.f32.mrb[0].mxu0
      %355 = vmatprep.mubr.bf16.mxu0 0
      %356 = vmatmul.mubr.bf16.gmra.mrb[0].mxu0 %v309
      %v357 = vpop.f32.mrb[0].mxu0
      %v358 = vadd.f32 0.0, %v357
      %v359 = vpop.f32.mrb[0].mxu0
      %v360 = vpop.f32.mrb[0].mxu0
      %v361 = vadd.f32 0.0, %v360
      %v362 = vpop.f32.mrb[0].mxu0
      %363 = vdwg.mxu0
      %v368 = vunpack.c.l.b16 %v280
      %v369 = vunpack.c.l.b16 %v281
      %v370 = vunpack.c.l.b16 %v282
      %v371 = vunpack.c.l.b16 %v283
      %v372 = vpack.c.b16 %v369, %v368
      %v373 = vpack.c.b16 %v371, %v370
      %v375 = vsel %vm187, %v372, 0
      %v378 = vsel %vm187, %v373, 0
      %v381 = vsel %vm311, %v292, 0
      %383 = vmatprep.subr.bf16.mxu0 0
      %384 = vmatpush1.bf16.msra.mxu0 %v381
      %385 = vmatprep.subr.bf16.mxu0 0
      %386 = vmatpush1.bf16.msra.mxu0 0
      %387 = vmatprep.subr.bf16.mxu0 0
      %388 = vmatpush1.bf16.msra.mxu0 0
      %389 = vmatprep.subr.bf16.mxu0 0
      %390 = vmatpush1.bf16.msra.mxu0 0
      %391 = vmatprep.subr.bf16.mxu0 0
      %392 = vmatpush1.bf16.msra.mxu0 0
      %393 = vmatprep.subr.bf16.mxu0 0
      %394 = vmatpush1.bf16.msra.mxu0 0
      %395 = vmatprep.subr.bf16.mxu0 0
      %396 = vmatpush1.bf16.msra.mxu0 0
      %397 = vmatprep.subr.bf16.mxu0 0
      %398 = vmatpush1.bf16.msra.mxu0 0
      %399 = vmatprep.subr.bf16.mxu0 0
      %400 = vmatpush1.bf16.msra.mxu0 0
      %401 = vmatprep.subr.bf16.mxu0 0
      %402 = vmatpush1.bf16.msra.mxu0 0
      %403 = vmatprep.subr.bf16.mxu0 0
      %404 = vmatpush1.bf16.msra.mxu0 0
      %405 = vmatprep.subr.bf16.mxu0 0
      %406 = vmatpush1.bf16.msra.mxu0 0
      %407 = vmatprep.subr.bf16.mxu0 0
      %408 = vmatpush1.bf16.msra.mxu0 0
      %409 = vmatprep.subr.bf16.mxu0 0
      %410 = vmatpush1.bf16.msra.mxu0 0
      %411 = vmatprep.subr.bf16.mxu0 0
      %412 = vmatpush1.bf16.msra.mxu0 0
      %413 = vmatprep.subr.bf16.mxu0 0
      %414 = vmatpush1.bf16.msra.mxu0 0
      %415 = vmatprep.mubr.bf16.mxu0 0
      %416 = vmatmul.mubr.bf16.gmra.mrb[0].mxu0 %v375
      %v417 = vpop.f32.mrb[0].mxu0
      %v418 = vadd.f32 %v350, %v417
      %v419 = vpop.f32.mrb[0].mxu0
      %v420 = vpop.f32.mrb[0].mxu0
      %v421 = vadd.f32 %v353, %v420
      %v422 = vpop.f32.mrb[0].mxu0
      %423 = vmatprep.mubr.bf16.mxu0 0
      %424 = vmatmul.mubr.bf16.gmra.mrb[0].mxu0 %v378
      %v425 = vpop.f32.mrb[0].mxu0
      %v426 = vadd.f32 %v358, %v425
      %v427 = vpop.f32.mrb[0].mxu0
      %v428 = vpop.f32.mrb[0].mxu0
      %v429 = vadd.f32 %v361, %v428
      %v430 = vpop.f32.mrb[0].mxu0
      %431 = vdwg.mxu0
      %v432 = vld [vmem:[%s2] sm:$0x1]
      %v434 = vlaneseq
      %v435 = vshrl.u32 %v434, 7
      %v436 = vsub.s32 0, %v435
      %v437 = vrot.slane %v432, %v436
      %v439 = vadd.f32 %v418, %v437
      %v440 = vadd.f32 %v421, %v437
      %v441 = vadd.f32 %v426, %v437
      %v442 = vadd.f32 %v429, %v437
      %443 = vst.msk [vmem:[%s175] sm:$0xff] %vm187, %v439
      %444 = vst.msk [vmem:[%s175 + $0x8] sm:$0xff] %vm187, %v440
      %445 = vst.msk [vmem:[%s175 + $0x10] sm:$0xff] %vm187, %v441
      %446 = vst.msk [vmem:[%s175 + $0x18] sm:$0xff] %vm187, %v442
      %s447 = smul.u32 4, %s14
      %p448 = scmp.lt.s32.totalorder %s447, 15
      %s449 = scalar_select %p448, %s447, 15
      %s450 = smul.addr %s449, 8
      %s451 = scalar_lea.vmem %s3, %s450
      // Predicated region
      $region33: #{tpu_custom_call.1} parent=31 // pred_check
        %p452 = pneg %p100
      $region34: #{tpu_custom_call.1} parent=31 // pred_check_branch
        %454 = sbr.rel (%p452) target = $region36
      $region35: #{tpu_custom_call.1} parent=31 // pred_region
        %s455 = smul.u32 4, %s14
      $region36: #{tpu_custom_call.1} parent=31 // pred_fallthru
        _
    $region32: #{tpu_custom_call.1} parent=5 // pred_fallthru
      _
    %p456 = scmp.le.s32.totalorder 2, %s9
    // Predicated region
    $region37: #{tpu_custom_call.1} parent=5 // pred_check
      %p457 = pneg %p456
    $region38: #{tpu_custom_call.1} parent=5 // pred_check_branch
      %459 = sbr.rel (%p457) target = $region40
    $region39: #{tpu_custom_call.1} parent=5 // pred_region
      %s460 = ssub.s32 %s9, 2
      // Predicated region
      $region41: #{tpu_custom_call.1} parent=39 // pred_check
        %p461 = pneg %p106
      $region42: #{tpu_custom_call.1} parent=39 // pred_check_branch
        %463 = sbr.rel (%p461) target = $region44
      $region43: #{tpu_custom_call.1} parent=39 // pred_region
        %s464 = smul.u32 4, %s15
        %p465 = scmp.lt.s32.totalorder %s464, 15
        %s466 = scalar_select %p465, %s464, 15
        %s467 = smul.addr %s466, 8
        %s468 = scalar_lea.vmem %s3, %s467
      $region44: #{tpu_custom_call.1} parent=39 // pred_fallthru
        _
    $region40: #{tpu_custom_call.1} parent=5 // pred_fallthru
      _
  $region6: #{tpu_custom_call.1} parent=0 // loop_footer
    %s13 = sadd.s32 1, %s9
  $region7: #{tpu_custom_call.1} parent=0 // loop_footer_branch
    %8 = sbr.rel target = $region3
  $region8: #{tpu_custom_call.1} parent=0 // loop_exit
    _

</llo_original>
